<compile_context>
chip_gen: v6e
topology: v6e:2x2x1
jax: 0.10.0
libtpu: 0.0.40
codegen_flags: <defaults>
</compile_context>

<pallas_src>
import math

import jax
import jax.numpy as jnp
from jax.experimental import pallas as pl
from jax.experimental.pallas import tpu as pltpu

IN_FEATURES = 3
OUT_FEATURES = 8
_GROUP = 16                         # rows fused per lane tile: 16 * 8 = 128 lanes
_GK = _GROUP * IN_FEATURES          # 48  input lanes per grouped row
_GN = _GROUP * OUT_FEATURES         # 128 output lanes per grouped row
_MAX_TR = 8192                      # grouped rows / tile = 131072 original rows


def _round_up(n, mult):
    return ((n + mult - 1) // mult) * mult


def linear_add_relu_kernel(x_ref, w_ref, b_ref, o_ref):
    # x_ref: (TR, 48)   16 consecutive input rows per grouped row (row-major bytes)
    # w_ref: (48, 128)  kron(I_16, weight.T)  -- block diagonal
    # b_ref: (1, 128)   tile(bias + other, 16)
    # o_ref: (TR, 128)  16 consecutive output rows per grouped row (row-major bytes)
    y = jnp.dot(x_ref[...], w_ref[...], preferred_element_type=jnp.float32)
    o_ref[...] = jnp.maximum(y + b_ref[...], 0.0).astype(o_ref.dtype)


def model_forward(x, weight, bias, other, *, max_tr=_MAX_TR):
    """relu(x @ weight.T + bias + other).  x: (..., 3) -> (..., 8), float32."""
    lead_shape = x.shape[:-1]
    m = math.prod(lead_shape) if lead_shape else 1

    x2d = x.reshape(m, IN_FEATURES).astype(jnp.float32)

    # Group rows so both kernel streams are lane-dense *views* (zero-copy
    # reshapes).  Padding only happens in the rare m % 16 != 0 case.
    m_g = _round_up(max(m, 1), _GROUP)
    if m_g != m:
        x2d = jnp.pad(x2d, ((0, m_g - m), (0, 0)))      # at most 15 extra rows
    rows_g = m_g // _GROUP
    xv = x2d.reshape(rows_g, _GK)                        # free reshape

    w = weight.astype(jnp.float32)
    w_big = jnp.kron(jnp.eye(_GROUP, dtype=jnp.float32), w.T)        # (48, 128)
    # TODO(synk): `other` is folded into the bias assuming it is a scalar (or
    # per-output-feature) constant, matching the module's `v1 + self.other`.
    b_big = jnp.tile(bias.astype(jnp.float32) + jnp.float32(other),
                     _GROUP).reshape(1, _GN)                          # (1, 128)

    # Tile selection: big tiles amortize the ~0.35 us/step pipeline overhead;
    # on large inputs keep >= ~4 tiles so v7x's two TensorCores both get work.
    if rows_g <= 2048:
        tr = rows_g                                      # single full block
    else:
        tr = min(max_tr, _round_up(pl.cdiv(rows_g, 4), 512))
    grid = (pl.cdiv(rows_g, tr),)                        # ragged last tile OK

    out = pl.pallas_call(
        linear_add_relu_kernel,
        out_shape=jax.ShapeDtypeStruct((rows_g, _GN), jnp.float32),
        grid_spec=pltpu.PrefetchScalarGridSpec(
            num_scalar_prefetch=0,
            grid=grid,
            in_specs=[
                pl.BlockSpec((tr, _GK), lambda i: (i, 0)),
                pl.BlockSpec((_GK, _GN), lambda i: (0, 0)),
                pl.BlockSpec((1, _GN), lambda i: (0, 0)),
            ],
            out_specs=pl.BlockSpec((tr, _GN), lambda i: (i, 0)),
        ),
        compiler_params=pltpu.CompilerParams(
            dimension_semantics=("parallel",),           # shard tiles on v7x TCs
            vmem_limit_bytes=32 * 1024 * 1024,           # covers v5e's 16 MiB default
        ),
    )(xv, w_big, b_big)

    out2d = out.reshape(m_g, OUT_FEATURES)               # free reshape back
    if m_g != m:
        out2d = out2d[:m]
    return out2d.reshape(*lead_shape, OUT_FEATURES)


if __name__ == "__main__":
    key = jax.random.PRNGKey(0)
    k_x, k_w, k_b = jax.random.split(key, 3)

    # Small shapes consistent with the module: last dim = Linear in_features (3).
    B, C, H = 2, 4, 16
    x = jax.random.normal(k_x, (B, C, H, IN_FEATURES), dtype=jnp.float32)

    # Deterministic parameter init (mimics nn.Linear default uniform bound).
    bound = 1.0 / math.sqrt(IN_FEATURES)
    weight = jax.random.uniform(
        k_w, (OUT_FEATURES, IN_FEATURES), minval=-bound, maxval=bound,
        dtype=jnp.float32)
    bias = jax.random.uniform(
        k_b, (OUT_FEATURES,), minval=-bound, maxval=bound, dtype=jnp.float32)
    other = 0.5  # the "other" value passed to Model(__init__)

    out = model_forward(x, weight, bias, other)
    jax.block_until_ready(out)

    # Exact element-wise f32 reference (no matmul rounding ambiguity).
    ref = jnp.maximum(
        x[..., 0:1] * weight[:, 0]
        + x[..., 1:2] * weight[:, 1]
        + x[..., 2:3] * weight[:, 2]
        + bias + other, 0.0)
    assert out.shape == (B, C, H, OUT_FEATURES)
    assert jnp.allclose(out, ref, atol=1e-4, rtol=1e-4)

    print("KERNEL_OK")
</pallas_src>

<mosaic_0001>
module attributes {stable_mosaic.version = 11 : i64} {
  func.func @linear_add_relu_kernel(%arg0: i32, %arg1: memref<8x48xf32, #tpu.memory_space<vmem>>, %arg2: memref<48x128xf32, #tpu.memory_space<vmem>>, %arg3: memref<1x128xf32, #tpu.memory_space<vmem>>, %arg4: memref<8x128xf32, #tpu.memory_space<vmem>>) attributes {dimension_semantics = [#tpu.dimension_semantics<parallel>], iteration_bounds = array<i64: 1>, scalar_prefetch = 0 : i64, scratch_operands = 0 : i64, tpu.core_type = #tpu.core_type<tc>, window_params = [{transform_indices = @transform_0, window_bounds = array<i64: 8, 48>}, {pipeline_mode = #tpu.pipeline_mode<synchronous>, transform_indices = @transform_1, window_bounds = array<i64: 48, 128>}, {pipeline_mode = #tpu.pipeline_mode<synchronous>, transform_indices = @transform_2, window_bounds = array<i64: 1, 128>}, {transform_indices = @transform_3, window_bounds = array<i64: 8, 128>}]} {
    %c0 = arith.constant 0 : index
    %c0_0 = arith.constant 0 : index
    %0 = vector.load %arg1[%c0, %c0_0] : memref<8x48xf32, #tpu.memory_space<vmem>>, vector<8x48xf32>
    %c0_1 = arith.constant 0 : index
    %c0_2 = arith.constant 0 : index
    %1 = vector.load %arg2[%c0_1, %c0_2] : memref<48x128xf32, #tpu.memory_space<vmem>>, vector<48x128xf32>
    %cst = arith.constant dense<0.000000e+00> : vector<8x128xf32>
    %2 = tpu.matmul %0, %1, %cst {dimension_numbers = #tpu.dot_dimension_numbers<[1], [0], [0], [1], [0, 0, 1, 1], [], []>} : vector<8x48xf32>, vector<48x128xf32>, vector<8x128xf32> -> vector<8x128xf32>
    %c0_3 = arith.constant 0 : index
    %c0_4 = arith.constant 0 : index
    %3 = vector.load %arg3[%c0_3, %c0_4] : memref<1x128xf32, #tpu.memory_space<vmem>>, vector<1x128xf32>
    %4 = vector.broadcast %3 : vector<1x128xf32> to vector<8x128xf32>
    %5 = arith.addf %2, %4 : vector<8x128xf32>
    %cst_5 = arith.constant 0.000000e+00 : f32
    %6 = vector.broadcast %cst_5 : f32 to vector<8x128xf32>
    %7 = arith.maximumf %5, %6 : vector<8x128xf32>
    %c0_6 = arith.constant 0 : index
    %c0_7 = arith.constant 0 : index
    %8 = vector.load %arg4[%c0_6, %c0_7] : memref<8x128xf32, #tpu.memory_space<vmem>>, vector<8x128xf32>
    tpu.vector_store %arg4[%c0_6, %c0_7], %7 {strides = array<i32>} : memref<8x128xf32, #tpu.memory_space<vmem>>, vector<8x128xf32>,
    return
  }
  func.func @transform_0(%arg0: i32) -> (i32, i32) {
    %c0_i32 = arith.constant 0 : i32
    %c0_i32_0 = arith.constant 0 : i32
    return %arg0, %c0_i32 : i32, i32
  }
  func.func @transform_1(%arg0: i32) -> (i32, i32) {
    %c0_i32 = arith.constant 0 : i32
    %c0_i32_0 = arith.constant 0 : i32
    %c0_i32_1 = arith.constant 0 : i32
    return %c0_i32, %c0_i32_0 : i32, i32
  }
  func.func @transform_2(%arg0: i32) -> (i32, i32) {
    %c0_i32 = arith.constant 0 : i32
    %c0_i32_0 = arith.constant 0 : i32
    %c0_i32_1 = arith.constant 0 : i32
    return %c0_i32, %c0_i32_0 : i32, i32
  }
  func.func @transform_3(%arg0: i32) -> (i32, i32) {
    %c0_i32 = arith.constant 0 : i32
    %c0_i32_0 = arith.constant 0 : i32
    return %arg0, %c0_i32 : i32, i32
  }
}

</mosaic_0001>

<llo_original>
// kernel: tpu_custom_call.1
$region0: #{tpu_custom_call.1}
  #allocation0 [shape = 'u32[]', space=smem, size = 0x4, offset = 0x4, fixed_abs, tag = 'smem constant byte address 0x4 - core index']
  #allocation1 [shape = 'u32[144,128]{1,0:T(1,128)}', space=vmem, size = 0x12000, scoped, tag = 'internal scratch']
  %s0 = inlined_call_operand.hbm [shape: f32[8,48], index: 0, kind: input, shape index: {}]
  %s1 = inlined_call_operand.hbm [shape: f32[48,128], index: 1, kind: input, shape index: {}]
  %s2 = inlined_call_operand.vmem [shape: f32[1,128], index: 2, kind: input, shape index: {}]
  %s3 = inlined_call_operand.hbm [shape: f32[8,128], index: 3, kind: output, shape index: {}]
  %s4 = sld [smem:[#allocation0]]
  $region30: #{tpu_custom_call.1} parent=0
    _
  %s6 = ssub.s32 1, %s4
  %s7 = scalar_select 0, %s6, %s4
  $region1: #{tpu_custom_call.1} parent=0
    #allocation2 [shape = 'u8[4096]{0}', space=vmem, size = 0x1000, scoped, tag = 'input window, operand 0, single buffered']
    #allocation3 [shape = 's32[1]{0}', space=sflag, size = 0x4, scoped, tag = 'scoped memory for tpu_custom_call.1']
    #allocation4 [shape = 's32[1]{0}', space=sflag, size = 0x4, scoped, tag = 'scoped memory for tpu_custom_call.1']
    #allocation5 [shape = 'u8[24576]{0}', space=vmem, size = 0x6000, scoped, tag = 'input window, operand 1, single buffered']
    #allocation6 [shape = 's32[1]{0}', space=sflag, size = 0x4, scoped, tag = 'scoped memory for tpu_custom_call.1']
    #allocation7 [shape = 'u8[4096]{0}', space=vmem, size = 0x1000, scoped, tag = 'output window, operand 0, single buffered']
    %8 = vsyncpa [#allocation3], 0
    %9 = vsyncpa [#allocation6], 0
    %10 = vsyncpa [#allocation4], 0
    // Predicated region
    $region2: #{tpu_custom_call.1} parent=1 // pred_check
      _
    $region3: #{tpu_custom_call.1} parent=1 // pred_check_branch
      %12 = sbr.rel (0) target = $region5
    $region4: #{tpu_custom_call.1} parent=1 // pred_region
      %s14 = ssub.s32 128, 128
      %15 = vsyncadd [#allocation3], %s14
      %s17 = sshll.u32 [#allocation2], 4
      %s18 = int_to_ptr.vmem [resolvable:$true] %s17
      %20 = dma.hbm_to_vmem [thread:$0]  %s0, 128, %s18, [#allocation3]
    $region5: #{tpu_custom_call.1} parent=1 // pred_fallthru
      _
    // Predicated region
    $region6: #{tpu_custom_call.1} parent=1 // pred_check
      _
    $region7: #{tpu_custom_call.1} parent=1 // pred_check_branch
      %22 = sbr.rel (0) target = $region9
    $region8: #{tpu_custom_call.1} parent=1 // pred_region
      %s24 = ssub.s32 768, 768
      %25 = vsyncadd [#allocation6], %s24
      %s26 = sshll.u32 [#allocation5], 4
      %s27 = int_to_ptr.vmem [resolvable:$true] %s26
      %32 = dma.hbm_to_vmem [thread:$0]  %s1, 768, %s27, [#allocation6], 128, 128, 8
    $region9: #{tpu_custom_call.1} parent=1 // pred_fallthru
      _
    // Predicated region
    $region10: #{tpu_custom_call.1} parent=1 // pred_check
      _
    $region11: #{tpu_custom_call.1} parent=1 // pred_check_branch
      %34 = sbr.rel (0) target = $region13
    $region12: #{tpu_custom_call.1} parent=1 // pred_region
      _
    $region13: #{tpu_custom_call.1} parent=1 // pred_fallthru
      _
    // Predicated region
    $region14: #{tpu_custom_call.1} parent=1 // pred_check
      _
    $region15: #{tpu_custom_call.1} parent=1 // pred_check_branch
      %36 = sbr.rel (0) target = $region17
    $region16: #{tpu_custom_call.1} parent=1 // pred_region
      %37 = dma.done [#allocation3], 128
    $region17: #{tpu_custom_call.1} parent=1 // pred_fallthru
      _
    // Predicated region
    $region18: #{tpu_custom_call.1} parent=1 // pred_check
      _
    $region19: #{tpu_custom_call.1} parent=1 // pred_check_branch
      %39 = sbr.rel (0) target = $region21
    $region20: #{tpu_custom_call.1} parent=1 // pred_region
      %40 = dma.done [#allocation6], 768
    $region21: #{tpu_custom_call.1} parent=1 // pred_fallthru
      _
    %v41 = vld [vmem:[#allocation2] sm:$0xff]
    %v42 = vld [vmem:[#allocation5] sm:$0xff]
    %v43 = vld [vmem:[#allocation5 + $0x8] sm:$0xff]
    %v44 = vld [vmem:[#allocation5 + $0x10] sm:$0xff]
    %v45 = vld [vmem:[#allocation5 + $0x18] sm:$0xff]
    %v46 = vld [vmem:[#allocation5 + $0x20] sm:$0xff]
    %v47 = vld [vmem:[#allocation5 + $0x28] sm:$0xff]
    %v48 = vld [vmem:[%s2] sm:$0x1]
    %v50 = vlaneseq
    %v51 = vshrl.u32 %v50, 7
    %v52 = vsub.s32 0, %v51
    %v53 = vrot.slane %v48, %v52
    %vm55 = vcmask 392192
    %v57 = vsel %vm55, %v41, 0
    %59 = vmatprep.subr.mxu0 0.0
    %60 = vmatpush1.msra.mxu0 0.0
    %61 = vmatprep.subr.mxu0 0.0
    %62 = vmatpush1.msra.mxu0 0.0
    %63 = vmatprep.subr.mxu0 0.0
    %64 = vmatpush1.msra.mxu0 0.0
    %65 = vmatprep.subr.mxu0 0.0
    %66 = vmatpush1.msra.mxu0 0.0
    %67 = vmatprep.subr.mxu0 0.0
    %68 = vmatpush1.msra.mxu0 0.0
    %69 = vmatprep.subr.mxu0 0.0
    %70 = vmatpush1.msra.mxu0 0.0
    %71 = vmatprep.subr.mxu0 0.0
    %72 = vmatpush1.msra.mxu0 0.0
    %73 = vmatprep.subr.mxu0 0.0
    %74 = vmatpush1.msra.mxu0 0.0
    %75 = vmatprep.subr.mxu0 0.0
    %76 = vmatpush1.msra.mxu0 0.0
    %77 = vmatprep.subr.mxu0 0.0
    %78 = vmatpush1.msra.mxu0 0.0
    %79 = vmatprep.subr.mxu0 0.0
    %80 = vmatpush1.msra.mxu0 %v47
    %81 = vmatprep.subr.mxu0 0.0
    %82 = vmatpush1.msra.mxu0 %v46
    %83 = vmatprep.subr.mxu0 0.0
    %84 = vmatpush1.msra.mxu0 %v45
    %85 = vmatprep.subr.mxu0 0.0
    %86 = vmatpush1.msra.mxu0 %v44
    %87 = vmatprep.subr.mxu0 0.0
    %88 = vmatpush1.msra.mxu0 %v43
    %89 = vmatprep.subr.mxu0 0.0
    %90 = vmatpush1.msra.mxu0 %v42
    %91 = vmatprep.subr.mxu0 0.0
    %92 = vmatpush2.msra.mxu0 0.0
    %93 = vmatprep.subr.mxu0 0.0
    %94 = vmatpush2.msra.mxu0 0.0
    %95 = vmatprep.subr.mxu0 0.0
    %96 = vmatpush2.msra.mxu0 0.0
    %97 = vmatprep.subr.mxu0 0.0
    %98 = vmatpush2.msra.mxu0 0.0
    %99 = vmatprep.subr.mxu0 0.0
    %100 = vmatpush2.msra.mxu0 0.0
    %101 = vmatprep.subr.mxu0 0.0
    %102 = vmatpush2.msra.mxu0 0.0
    %103 = vmatprep.subr.mxu0 0.0
    %104 = vmatpush2.msra.mxu0 0.0
    %105 = vmatprep.subr.mxu0 0.0
    %106 = vmatpush2.msra.mxu0 0.0
    %107 = vmatprep.subr.mxu0 0.0
    %108 = vmatpush2.msra.mxu0 0.0
    %109 = vmatprep.subr.mxu0 0.0
    %110 = vmatpush2.msra.mxu0 0.0
    %111 = vmatprep.subr.mxu0 0.0
    %112 = vmatpush2.msra.mxu0 0.0
    %113 = vmatprep.subr.mxu0 0.0
    %114 = vmatpush2.msra.mxu0 0.0
    %115 = vmatprep.subr.mxu0 0.0
    %116 = vmatpush2.msra.mxu0 0.0
    %117 = vmatprep.subr.mxu0 0.0
    %118 = vmatpush2.msra.mxu0 0.0
    %119 = vmatprep.subr.mxu0 0.0
    %120 = vmatpush2.msra.mxu0 0.0
    %121 = vmatprep.subr.mxu0 0.0
    %122 = vmatpush2.msra.mxu0 0.0
    %123 = vmatprep.mubr.f32.mxu0 0.0
    %124 = vmatmul.mubr.f32.gmra.mxu0 %v57
    %v125 = vpop.f32.mrf.mxu0
    %v126 = vadd.f32 %v53, %v125
    %v127 = vpop.f32.mrf.mxu0
    %128 = vdwg.mxu0
    %v129 = vmax.f32 %v126, 0.0
    %130 = vst [vmem:[#allocation7] sm:$0xff] %v129
    // Predicated region
    $region22: #{tpu_custom_call.1} parent=1 // pred_check
      _
    $region23: #{tpu_custom_call.1} parent=1 // pred_check_branch
      %132 = sbr.rel (0) target = $region25
    $region24: #{tpu_custom_call.1} parent=1 // pred_region
      %s134 = ssub.s32 128, 128
      %135 = vsyncadd [#allocation4], %s134
      %s137 = sshll.u32 [#allocation7], 4
      %s138 = int_to_ptr.vmem [resolvable:$true] %s137
      %140 = dma.vmem_to_hbm [thread:$0]  %s138, 128, %s3, [#allocation4]
    $region25: #{tpu_custom_call.1} parent=1 // pred_fallthru
      _
    // Predicated region
    $region26: #{tpu_custom_call.1} parent=1 // pred_check
      _
    $region27: #{tpu_custom_call.1} parent=1 // pred_check_branch
      %142 = sbr.rel (0) target = $region29
    $region28: #{tpu_custom_call.1} parent=1 // pred_region
      %143 = dma.done [#allocation4], 128
    $region29: #{tpu_custom_call.1} parent=1 // pred_fallthru
      _
    %144 = vsyncpa [#allocation3], 1
    %145 = vsyncpa [#allocation6], 1
    %146 = vsyncpa [#allocation4], 1

</llo_original>
